<compile_context>
chip_gen: v7x
topology: tpu7x:2x2x1
jax: 0.10.0
libtpu: 0.0.40
codegen_flags: <defaults>
</compile_context>

<pallas_src>
import jax
import jax.numpy as jnp
from jax.experimental import pallas as pl
from jax.experimental.pallas import tpu as pltpu

_LANES = 128
_SUBLANES = 8


def _round_up(x, m):
    return ((x + m - 1) // m) * m


def _vmem_config():
    """(per-input tile budget, scoped vmem limit, prefer>=2 tiles) per generation."""
    vmem_cap = 64 * 1024 * 1024  # conservative default (v7x-safe) if query fails
    try:
        info = pltpu.get_tpu_info()
        for name in ("vmem_capacity_bytes", "vmem_size_bytes", "vmem_bytes"):
            v = getattr(info, name, None)
            if v:
                vmem_cap = int(v)
                break
    except Exception:
        pass
    if vmem_cap >= 100 * 1024 * 1024:
        # v5e / v6e: 128 MiB physical VMEM -> bigger tiles, higher scoped limit.
        return 6 * 1024 * 1024, 96 * 1024 * 1024, False
    # v7x (64 MiB VMEM per TensorCore) or unknown: stay small, feed both TCs.
    return (5 * 1024 * 1024) // 2, 40 * 1024 * 1024, True


def _choose_row_tile(b, c, itemsizes, budget_per_input, vmem_limit, prefer_two_tiles):
    c_vmem = _round_up(c, _LANES)                       # last dim pads to 128 in VMEM
    dense_row_bytes = [c_vmem * s for s in itemsizes]   # per dense input, per row
    label_row_bytes = _LANES * 4                        # (rows,1) i32 pads to (rows,128)

    # Per-input cap (DMA-efficient tile size) ...
    rows = budget_per_input // max(1, max(dense_row_bytes))
    # ... and total pipeline footprint (2x double-buffer of 3 dense + label blocks)
    # must fit the scoped VMEM limit with headroom.
    per_row_total = 2 * (sum(dense_row_bytes) + label_row_bytes)
    rows = min(rows, (vmem_limit - 4 * 1024 * 1024) // max(1, per_row_total))

    rows = max(_SUBLANES, (rows // _SUBLANES) * _SUBLANES)
    rows = min(rows, _round_up(b, _SUBLANES))
    if prefer_two_tiles and b >= 2 * _SUBLANES:
        # Ensure >= 2 grid steps so the "parallel" axis lands on both v7x TCs.
        rows = min(rows, _round_up(pl.cdiv(b, 2), _SUBLANES))
    return rows


def _make_kernel(b, row_tile):
    def kernel(dist_ref, pred_ref, label_dist_ref, label_ref, out_ref):
        # (TB, C) blocks; widen to f32 in-register (v5e VPU has no bf16 math).
        dist = dist_ref[...].astype(jnp.float32)
        pred = pred_ref[...].astype(jnp.float32)
        label_dist = label_dist_ref[...].astype(jnp.float32)
        label = label_ref[...]                                   # (TB, 1) int32

        tb, c = pred.shape

        # Row-validity mask for the ragged last tile (no wrapper-side padding).
        row_ids = (jax.lax.broadcasted_iota(jnp.int32, (tb, 1), 0)
                   + pl.program_id(0) * row_tile)
        valid = row_ids < b                                      # (TB, 1) bool

        # --- KL term: label_dist * (log(label_dist) - dist); xlogy-style zero at
        # label_dist == 0, and zero for invalid (out-of-bounds) rows.
        kl_pw = jnp.where(jnp.logical_and(valid, label_dist > 0.0),
                          label_dist * (jnp.log(label_dist) - dist),
                          0.0)
        # Sublane (VPU) reduction first, then one cross-lane (XLU) sum.
        kl_partial = jnp.sum(jnp.sum(kl_pw, axis=0, keepdims=True))

        # --- L1 term on first-occurrence argmax(pred, axis=1) vs label.
        max_val = jnp.max(pred, axis=1, keepdims=True)           # (TB, 1)
        col_idx = jax.lax.broadcasted_iota(jnp.int32, (tb, c), 1)
        argmax_idx = jnp.min(
            jnp.where(pred == max_val, col_idx, jnp.int32(c)),
            axis=1, keepdims=True)                               # (TB, 1) int32
        l1_pw = jnp.where(
            valid,
            jnp.abs(argmax_idx.astype(jnp.float32) - label.astype(jnp.float32)),
            0.0)
        l1_partial = jnp.sum(l1_pw)

        # Lane-dense, (8,128)-aligned unmasked store of the per-tile partial sum.
        out_ref[...] = jnp.full(out_ref.shape, kl_partial + l1_partial,
                                dtype=jnp.float32)

    return kernel


def kl_div_l1_loss(features, targets, *, row_tile=None):
    """features = (dist, pred); targets = (label_dist, label). Returns f32 scalar."""
    dist, pred = features
    label_dist, label = targets

    b, c = dist.shape
    itemsizes = (jnp.dtype(dist.dtype).itemsize,
                 jnp.dtype(pred.dtype).itemsize,
                 jnp.dtype(label_dist.dtype).itemsize)

    budget_per_input, vmem_limit, prefer_two_tiles = _vmem_config()
    if row_tile is None:
        row_tile = _choose_row_tile(b, c, itemsizes, budget_per_input,
                                    vmem_limit, prefer_two_tiles)
    row_tile = max(_SUBLANES, (row_tile // _SUBLANES) * _SUBLANES)

    num_tiles = pl.cdiv(b, row_tile)

    # torch.squeeze(label): tiny (B,) int32 column; no padding of dense inputs.
    label_col = jnp.reshape(label, (-1,)).astype(jnp.int32).reshape(b, 1)

    partials = pl.pallas_call(
        _make_kernel(b, row_tile),
        out_shape=jax.ShapeDtypeStruct((num_tiles, _SUBLANES, _LANES), jnp.float32),
        grid=(num_tiles,),
        in_specs=[
            pl.BlockSpec((row_tile, c), lambda i: (i, 0)),
            pl.BlockSpec((row_tile, c), lambda i: (i, 0)),
            pl.BlockSpec((row_tile, c), lambda i: (i, 0)),
            pl.BlockSpec((row_tile, 1), lambda i: (i, 0)),
        ],
        out_specs=pl.BlockSpec((1, _SUBLANES, _LANES), lambda i: (i, 0, 0)),
        compiler_params=pltpu.CompilerParams(
            dimension_semantics=("parallel",),
            vmem_limit_bytes=vmem_limit,
        ),
    )(dist, pred, label_dist, label_col)

    # Trailing reduce over per-tile partials; both loss terms are divided by B.
    return jnp.sum(partials[:, 0, 0]) / jnp.float32(b)


def _reference(features, targets):
    dist, pred = features
    label_dist, label = targets
    b = label_dist.shape[0]
    loss_kl = jnp.sum(label_dist * (jnp.log(label_dist) - dist)) / b
    lab = jnp.reshape(jnp.squeeze(label), (-1,)).astype(jnp.float32)
    l1 = jnp.mean(jnp.abs(jnp.argmax(pred, axis=1).astype(jnp.float32) - lab))
    return loss_kl + l1


if __name__ == "__main__":
    # --- nominal small shape (single tile) ---
    k1, k2, k3, k4, k5, k6, k7, k8 = jax.random.split(jax.random.PRNGKey(0), 8)
    B, C = 8, 32
    dist = jax.nn.log_softmax(jax.random.normal(k1, (B, C), jnp.float32), axis=-1)
    pred = jax.random.normal(k2, (B, C), jnp.float32)
    label_dist = jax.nn.softmax(jax.random.normal(k3, (B, C), jnp.float32), axis=-1)
    label = jax.random.randint(k4, (B, 1), 0, C, jnp.int32)

    out = jax.block_until_ready(kl_div_l1_loss((dist, pred), (label_dist, label)))
    ref = jax.block_until_ready(_reference((dist, pred), (label_dist, label)))
    assert jnp.allclose(out, ref, rtol=1e-5, atol=1e-5), (out, ref)

    # --- multi-tile + ragged-last-tile path (6 grid steps, in-kernel row masking) ---
    B2, C2 = 41, 33
    dist2 = jax.nn.log_softmax(jax.random.normal(k5, (B2, C2), jnp.float32), axis=-1)
    pred2 = jax.random.normal(k6, (B2, C2), jnp.float32)
    label_dist2 = jax.nn.softmax(jax.random.normal(k7, (B2, C2), jnp.float32), axis=-1)
    label2 = jax.random.randint(k8, (B2, 1), 0, C2, jnp.int32)

    out2 = jax.block_until_ready(
        kl_div_l1_loss((dist2, pred2), (label_dist2, label2), row_tile=8))
    ref2 = jax.block_until_ready(_reference((dist2, pred2), (label_dist2, label2)))
    assert jnp.allclose(out2, ref2, rtol=1e-5, atol=1e-5), (out2, ref2)

    print("KERNEL_OK")
</pallas_src>

<mosaic_0001>
module attributes {stable_mosaic.version = 11 : i64} {
  func.func @kernel(%arg0: i32, %arg1: memref<8x32xf32, #tpu.memory_space<vmem>>, %arg2: memref<8x32xf32, #tpu.memory_space<vmem>>, %arg3: memref<8x32xf32, #tpu.memory_space<vmem>>, %arg4: memref<8x1xi32, #tpu.memory_space<vmem>>, %arg5: memref<1x8x128xf32, #tpu.memory_space<vmem>>) attributes {dimension_semantics = [#tpu.dimension_semantics<parallel>], iteration_bounds = array<i64: 1>, scalar_prefetch = 0 : i64, scratch_operands = 0 : i64, tpu.core_type = #tpu.core_type<tc>, window_params = [{transform_indices = @transform_0, window_bounds = array<i64: 8, 32>}, {transform_indices = @transform_1, window_bounds = array<i64: 8, 32>}, {transform_indices = @transform_2, window_bounds = array<i64: 8, 32>}, {transform_indices = @transform_3, window_bounds = array<i64: 8, 1>}, {transform_indices = @transform_4, window_bounds = array<i64: 1, 8, 128>}]} {
    %c0 = arith.constant 0 : index
    %c0_0 = arith.constant 0 : index
    %0 = vector.load %arg1[%c0, %c0_0] : memref<8x32xf32, #tpu.memory_space<vmem>>, vector<8x32xf32>
    %c0_1 = arith.constant 0 : index
    %c0_2 = arith.constant 0 : index
    %1 = vector.load %arg2[%c0_1, %c0_2] : memref<8x32xf32, #tpu.memory_space<vmem>>, vector<8x32xf32>
    %c0_3 = arith.constant 0 : index
    %c0_4 = arith.constant 0 : index
    %2 = vector.load %arg3[%c0_3, %c0_4] : memref<8x32xf32, #tpu.memory_space<vmem>>, vector<8x32xf32>
    %c0_5 = arith.constant 0 : index
    %c0_6 = arith.constant 0 : index
    %3 = vector.load %arg4[%c0_5, %c0_6] : memref<8x1xi32, #tpu.memory_space<vmem>>, vector<8x1xi32>
    %4 = tpu.iota {dimensions = array<i32: 0>} : vector<8x1xi32>
    %c8_i32 = arith.constant 8 : i32
    %5 = arith.muli %arg0, %c8_i32 : i32
    %6 = vector.broadcast %5 : i32 to vector<8x1xi32>
    %7 = arith.addi %4, %6 : vector<8x1xi32>
    %c8_i32_7 = arith.constant 8 : i32
    %8 = vector.broadcast %c8_i32_7 : i32 to vector<8x1xi32>
    %9 = arith.cmpi slt, %7, %8 : vector<8x1xi32>
    %cst = arith.constant 0.000000e+00 : f32
    %10 = vector.broadcast %cst : f32 to vector<8x32xf32>
    %11 = arith.cmpf ogt, %2, %10 : vector<8x32xf32>
    %12 = vector.broadcast %9 : vector<8x1xi1> to vector<8x32xi1>
    %13 = arith.andi %12, %11 : vector<8x32xi1>
    %14 = math.log %2 : vector<8x32xf32>
    %15 = arith.subf %14, %0 : vector<8x32xf32>
    %16 = arith.mulf %2, %15 : vector<8x32xf32>
    %cst_8 = arith.constant 0.000000e+00 : f32
    %17 = vector.broadcast %cst_8 : f32 to vector<8x32xf32>
    %18 = arith.select %13, %16, %17 : vector<8x32xi1>, vector<8x32xf32>
    %cst_9 = arith.constant dense<0.000000e+00> : vector<32xf32>
    %19 = vector.multi_reduction <add>, %18, %cst_9 [0] : vector<8x32xf32> to vector<32xf32>
    %20 = vector.shape_cast %19 : vector<32xf32> to vector<1x32xf32>
    %21 = vector.shape_cast %20 : vector<1x32xf32> to vector<1x1x32xf32>
    %cst_10 = arith.constant dense<0.000000e+00> : vector<1xf32>
    %22 = vector.multi_reduction <add>, %21, %cst_10 [1, 2] : vector<1x1x32xf32> to vector<1xf32>
    %23 = vector.shape_cast %22 : vector<1xf32> to vector<1x1x1xf32>
    %24 = vector.extract %23[0, 0, 0] : f32 from vector<1x1x1xf32>
    %cst_11 = arith.constant dense<0xFF800000> : vector<8xf32>
    %25 = vector.multi_reduction <maximumf>, %1, %cst_11 [1] : vector<8x32xf32> to vector<8xf32>
    %26 = vector.shape_cast %25 : vector<8xf32> to vector<8x1xf32>
    %27 = tpu.iota {dimensions = array<i32: 1>} : vector<8x32xi32>
    %28 = vector.broadcast %26 : vector<8x1xf32> to vector<8x32xf32>
    %29 = arith.cmpf oeq, %1, %28 : vector<8x32xf32>
    %c32_i32 = arith.constant 32 : i32
    %30 = vector.broadcast %c32_i32 : i32 to vector<8x32xi32>
    %31 = arith.select %29, %27, %30 : vector<8x32xi1>, vector<8x32xi32>
    %cst_12 = arith.constant dense<2147483647> : vector<8xi32>
    %32 = vector.multi_reduction <minsi>, %31, %cst_12 [1] : vector<8x32xi32> to vector<8xi32>
    %33 = vector.shape_cast %32 : vector<8xi32> to vector<8x1xi32>
    %34 = arith.sitofp %33 : vector<8x1xi32> to vector<8x1xf32>
    %35 = arith.sitofp %3 : vector<8x1xi32> to vector<8x1xf32>
    %36 = arith.subf %34, %35 : vector<8x1xf32>
    %37 = math.absf %36 : vector<8x1xf32>
    %cst_13 = arith.constant 0.000000e+00 : f32
    %38 = vector.broadcast %cst_13 : f32 to vector<8x1xf32>
    %39 = arith.select %9, %37, %38 : vector<8x1xi1>, vector<8x1xf32>
    %40 = vector.shape_cast %39 : vector<8x1xf32> to vector<1x8x1xf32>
    %cst_14 = arith.constant dense<0.000000e+00> : vector<1xf32>
    %41 = vector.multi_reduction <add>, %40, %cst_14 [1, 2] : vector<1x8x1xf32> to vector<1xf32>
    %42 = vector.shape_cast %41 : vector<1xf32> to vector<1x1x1xf32>
    %43 = vector.extract %42[0, 0, 0] : f32 from vector<1x1x1xf32>
    %44 = arith.addf %24, %43 : f32
    %45 = vector.broadcast %44 : f32 to vector<1x8x128xf32>
    %c0_15 = arith.constant 0 : index
    %c0_16 = arith.constant 0 : index
    %c0_17 = arith.constant 0 : index
    %46 = vector.load %arg5[%c0_15, %c0_16, %c0_17] : memref<1x8x128xf32, #tpu.memory_space<vmem>>, vector<1x8x128xf32>
    tpu.vector_store %arg5[%c0_15, %c0_16, %c0_17], %45 {strides = array<i32>} : memref<1x8x128xf32, #tpu.memory_space<vmem>>, vector<1x8x128xf32>,
    return
  }
  func.func @transform_0(%arg0: i32) -> (i32, i32) {
    %c0_i32 = arith.constant 0 : i32
    %c0_i32_0 = arith.constant 0 : i32
    return %arg0, %c0_i32 : i32, i32
  }
  func.func @transform_1(%arg0: i32) -> (i32, i32) {
    %c0_i32 = arith.constant 0 : i32
    %c0_i32_0 = arith.constant 0 : i32
    return %arg0, %c0_i32 : i32, i32
  }
  func.func @transform_2(%arg0: i32) -> (i32, i32) {
    %c0_i32 = arith.constant 0 : i32
    %c0_i32_0 = arith.constant 0 : i32
    return %arg0, %c0_i32 : i32, i32
  }
  func.func @transform_3(%arg0: i32) -> (i32, i32) {
    %c0_i32 = arith.constant 0 : i32
    %c0_i32_0 = arith.constant 0 : i32
    return %arg0, %c0_i32 : i32, i32
  }
  func.func @transform_4(%arg0: i32) -> (i32, i32, i32) {
    %c0_i32 = arith.constant 0 : i32
    %c0_i32_0 = arith.constant 0 : i32
    %c0_i32_1 = arith.constant 0 : i32
    return %arg0, %c0_i32, %c0_i32_0 : i32, i32, i32
  }
}

</mosaic_0001>

<llo_original>
// kernel: tpu_custom_call.1
$region0: #{tpu_custom_call.1}
  #allocation0 [shape = 'u32[]', space=smem, size = 0x4, offset = 0x4, fixed_abs, tag = 'smem constant byte address 0x4 - core index']
  #allocation1 [shape = 'u32[144,128]{1,0:T(1,128)}', space=vmem, size = 0x12000, scoped, tag = 'internal scratch']
  %s0 = inlined_call_operand.vmem [shape: f32[8,32], index: 0, kind: input, shape index: {}]
  %s1 = inlined_call_operand.hbm [shape: f32[8,32], index: 1, kind: input, shape index: {}]
  %s2 = inlined_call_operand.vmem [shape: f32[8,32], index: 2, kind: input, shape index: {}]
  %s3 = inlined_call_operand.vmem [shape: s32[8,1], index: 3, kind: input, shape index: {}]
  %s4 = inlined_call_operand.hbm [shape: f32[1,8,128], index: 4, kind: output, shape index: {}]
  %s5 = sld [smem:[#allocation0]]
  $region30: #{tpu_custom_call.1} parent=0
    _
  %s7 = ssub.s32 1, %s5
  %s8 = scalar_select 0, %s7, %s5
  $region1: #{tpu_custom_call.1} parent=0
    #allocation2 [shape = 'u8[4096]{0}', space=vmem, size = 0x1000, scoped, tag = 'input window, operand 1, single buffered']
    #allocation3 [shape = 's32[1]{0}', space=sflag, size = 0x4, scoped, tag = 'scoped memory for tpu_custom_call.1']
    #allocation4 [shape = 's32[1]{0}', space=sflag, size = 0x4, scoped, tag = 'scoped memory for tpu_custom_call.1']
    #allocation5 [shape = 'u8[4096]{0}', space=vmem, size = 0x1000, scoped, tag = 'output window, operand 0, single buffered']
    %9 = vsyncpa [#allocation3], 0
    %10 = vsyncpa [#allocation4], 0
    // Predicated region
    $region2: #{tpu_custom_call.1} parent=1 // pred_check
      _
    $region3: #{tpu_custom_call.1} parent=1 // pred_check_branch
      %12 = sbr.rel (0) target = $region5
    $region4: #{tpu_custom_call.1} parent=1 // pred_region
      _
    $region5: #{tpu_custom_call.1} parent=1 // pred_fallthru
      _
    // Predicated region
    $region6: #{tpu_custom_call.1} parent=1 // pred_check
      _
    $region7: #{tpu_custom_call.1} parent=1 // pred_check_branch
      %14 = sbr.rel (0) target = $region9
    $region8: #{tpu_custom_call.1} parent=1 // pred_region
      %s16 = ssub.s32 128, 128
      %17 = vsyncadd [#allocation3], %s16
      %s19 = sshll.u32 [#allocation2], 4
      %s20 = int_to_ptr.vmem [resolvable:$true] %s19
      %22 = dma.hbm_to_vmem [thread:$0]  %s1, 128, %s20, [#allocation3]
    $region9: #{tpu_custom_call.1} parent=1 // pred_fallthru
      _
    // Predicated region
    $region10: #{tpu_custom_call.1} parent=1 // pred_check
      _
    $region11: #{tpu_custom_call.1} parent=1 // pred_check_branch
      %24 = sbr.rel (0) target = $region13
    $region12: #{tpu_custom_call.1} parent=1 // pred_region
      _
    $region13: #{tpu_custom_call.1} parent=1 // pred_fallthru
      _
    // Predicated region
    $region14: #{tpu_custom_call.1} parent=1 // pred_check
      _
    $region15: #{tpu_custom_call.1} parent=1 // pred_check_branch
      %26 = sbr.rel (0) target = $region17
    $region16: #{tpu_custom_call.1} parent=1 // pred_region
      _
    $region17: #{tpu_custom_call.1} parent=1 // pred_fallthru
      _
    // Predicated region
    $region18: #{tpu_custom_call.1} parent=1 // pred_check
      _
    $region19: #{tpu_custom_call.1} parent=1 // pred_check_branch
      %28 = sbr.rel (0) target = $region21
    $region20: #{tpu_custom_call.1} parent=1 // pred_region
      %29 = dma.done [#allocation3], 128
    $region21: #{tpu_custom_call.1} parent=1 // pred_fallthru
      _
    %v30 = vld [vmem:[%s0] sm:$0xff]
    %v31 = vld [vmem:[#allocation2] sm:$0xff]
    %v32 = vld [vmem:[%s2] sm:$0xff]
    %v33 = vld [vmem:[%s3] sm:$0xff]
    %v34 = vlaneseq
    %v35 = vshrl.u32 %v34, 7
    %s36 = smul.u32 0, 8
    %v37 = vstv %s36
    %v38 = vadd.s32 %v35, %v37
    %vm39 = vcmp.lt.s32.totalorder %v38, 8
    %vm40 = vcmp.gt.f32.partialorder %v32, 0.0
    %v41 = vsel %vm39, 1, 0
    %vm42 = vcmp.eq.s32.totalorder %v41, 1
    %vm43 = vmand %vm42, %vm40
    %v44 = vlog2.pop %v32
    %v45 = vmul.f32 %v44, 0.6931472
    %v46 = vsub.f32 %v45, %v30
    %v47 = vmul.f32 %v32, %v46
    %v48 = vsel %vm43, %v47, 0.0
    %vm49 = vcmask 261120
    %v50 = vsel %vm49, %v48, 0.0
    %v51 = vrot.slane %v50, 4
    %v52 = vadd.f32 %v50, %v51
    %v53 = vrot.slane %v52, 2
    %v54 = vadd.f32 %v52, %v53
    %v55 = vrot.slane %v54, 1
    %v56 = vadd.f32 %v54, %v55
    %vm57 = vcmask 253952
    %v58 = vsel %vm57, %v56, 0.0
    %59 = vadd.xlane.f32.xlu0 %v58
    %v60 = vpop.xlane.xlu0 %59
    %v61 = vrot.slane %v60, 4
    %v62 = vadd.f32 %v60, %v61
    %v63 = vrot.slane %v62, 2
    %v64 = vadd.f32 %v62, %v63
    %v65 = vrot.slane %v64, 1
    %v66 = vadd.f32 %v64, %v65
    %s67 = vtos %v66
    %v68 = vsel %vm49, %v31, -inf
    %69 = vmax.xlane.f32.xlu0 %v68
    %v70 = vpop.xlane.xlu0 %69
    %v71 = vlaneseq
    %v72 = vand.u32 %v71, 127
    %vm73 = vcmp.eq.f32.partialorder %v31, %v70
    %v74 = vsel %vm73, %v72, 32
    %v75 = vsel %vm49, %v74, 2147483647
    %v76 = vand.u32 %v75, 65535
    %v77 = vshra.s32 %v75, 16
    %v78 = vcvt.s32.f32 %v76
    %v79 = vcvt.s32.f32 %v77
    %80 = vmin.xlane.f32.xlu0 %v79
    %v81 = vpop.xlane.xlu0 %80
    %vm82 = vcmp.eq.f32.partialorder %v79, %v81
    %v83 = vsel %vm82, %v78, inf
    %84 = vmin.xlane.f32.xlu0 %v83
    %v85 = vpop.xlane.xlu0 %84
    %v86 = vcvt.f32.s32 %v85
    %v87 = vcvt.f32.s32 %v81
    %v88 = vshll.u32 %v87, 16
    %v89 = vadd.s32 %v88, %v86
    %v90 = vcvt.s32.f32 %v89
    %v91 = vcvt.s32.f32 %v33
    %v92 = vsub.f32 %v90, %v91
    %v93 = vand.u32 2147483647, %v92
    %v94 = vsel %vm39, %v93, 0.0
    %vm95 = vcmask 7168
    %v96 = vsel %vm95, %v94, 0.0
    %97 = vadd.xlane.f32.xlu0 %v96
    %v98 = vpop.xlane.xlu0 %97
    %v99 = vrot.slane %v98, 4
    %v100 = vadd.f32 %v98, %v99
    %v101 = vrot.slane %v100, 2
    %v102 = vadd.f32 %v100, %v101
    %v103 = vrot.slane %v102, 1
    %v104 = vadd.f32 %v102, %v103
    %s105 = vtos %v104
    %s106 = sadd.f32 %s67, %s105
    %v107 = vstv %s106
    %108 = vst [vmem:[#allocation5] sm:$0xff] %v107
    // Predicated region
    $region22: #{tpu_custom_call.1} parent=1 // pred_check
      _
    $region23: #{tpu_custom_call.1} parent=1 // pred_check_branch
      %110 = sbr.rel (0) target = $region25
    $region24: #{tpu_custom_call.1} parent=1 // pred_region
      %s112 = ssub.s32 128, 128
      %113 = vsyncadd [#allocation4], %s112
      %s115 = sshll.u32 [#allocation5], 4
      %s116 = int_to_ptr.vmem [resolvable:$true] %s115
      %118 = dma.vmem_to_hbm [thread:$0]  %s116, 128, %s4, [#allocation4]
    $region25: #{tpu_custom_call.1} parent=1 // pred_fallthru
      _
    // Predicated region
    $region26: #{tpu_custom_call.1} parent=1 // pred_check
      _
    $region27: #{tpu_custom_call.1} parent=1 // pred_check_branch
      %120 = sbr.rel (0) target = $region29
    $region28: #{tpu_custom_call.1} parent=1 // pred_region
      %121 = dma.done [#allocation4], 128
    $region29: #{tpu_custom_call.1} parent=1 // pred_fallthru
      _
    %122 = vsyncpa [#allocation3], 1
    %123 = vsyncpa [#allocation4], 1

</llo_original>
